<compile_context>
chip_gen: v6e
topology: v6e:2x2x1
jax: 0.10.0
libtpu: 0.0.40
codegen_flags: <defaults>
</compile_context>

<pallas_src>
import functools

import jax
import jax.numpy as jnp
from jax.experimental import pallas as pl
from jax.experimental.pallas import tpu as pltpu


def _affine_coupling_kernel(x_ref, w1_ref, b1_ref, wst_ref, bst_ref,
                            z_ref, logdet_ref, *, m, d2, matmul_dtype):
    x = x_ref[...]
    x1 = x[:, :m]                       # lane-aligned static slices (free when
    x2 = x[:, m:].astype(jnp.float32)   # m, d2 are multiples of 128)

    # Stage 1: h = tanh(x1 @ W1 + b1)                    (MXU + EUP)
    h = jnp.tanh(
        jnp.dot(x1.astype(matmul_dtype), w1_ref[...],
                preferred_element_type=jnp.float32) + b1_ref[...])

    # Stage 2 (fused heads): [log_s | t] = h @ [Ws | Wt] + [bs | bt]
    # One N = 2*d2 matmul -> fills the 256-wide v6e/v7x MXU, single LHS pass.
    st = jnp.dot(h.astype(matmul_dtype), wst_ref[...],
                 preferred_element_type=jnp.float32) + bst_ref[...]
    log_s = st[:, :d2]
    t = st[:, d2:]

    # Affine coupling + x1 passthrough, both written into one lane-dense
    # (tb, D) output block (exp on EUP, mul/add on VPU).
    z_ref[:, :m] = x1.astype(z_ref.dtype)
    z_ref[:, m:] = (jnp.exp(log_s) * x2 + t).astype(z_ref.dtype)

    # Per-row log|det J| = sum(log_s), emitted as a lane-dense (1, tb) row:
    # XLU transpose + sublane reduce keeps the store unmasked and dense.
    logdet_ref[...] = jnp.sum(log_s.T, axis=0,
                              keepdims=True).astype(logdet_ref.dtype)


def _pick_batch_tile(batch, requested):
    """Batch tile choice.

    Prefer a multiple of 128 rows (keeps the (1, tb) log_det block legal and
    lane-dense) that still yields >= 2 grid steps, so both v7x TensorCores get
    work.  Tiny batches fall back to a single 8-row-aligned full block (the
    (1, tb) block then equals the full padded batch, which is also legal).
    """
    requested = max(128, (requested // 128) * 128)
    two_step_max = ((batch // 2) // 128) * 128
    if two_step_max >= 128:
        return min(requested, two_step_max)
    return max(8, pl.cdiv(batch, 8) * 8)


def affine_coupling_forward(x, w1, b1, ws, bs, wt, bt, *, tile_b=512,
                            matmul_dtype=jnp.bfloat16):
    """Fused AffineCouplingLayer forward.  Returns (z, log_det)."""
    B, D = x.shape
    m, H = w1.shape
    d2 = D - m
    assert ws.shape == (H, d2) and wt.shape == (H, d2)
    assert b1.shape == (1, H) and bs.shape == (1, d2) and bt.shape == (1, d2)

    # Fuse the two second-stage weight matrices once in the wrapper (callers
    # holding the weights can pre-fuse to avoid even this small copy).
    wst = jnp.concatenate([ws, wt], axis=1).astype(matmul_dtype)
    bst = jnp.concatenate([bs, bt], axis=1).astype(jnp.float32)
    w1c = w1.astype(matmul_dtype)
    b1c = b1.astype(jnp.float32)

    # Batch tiling + padding for ragged batches (avoids the full-batch-block
    # fallback that can blow the scoped VMEM limit for large odd batches).
    tb = _pick_batch_tile(B, tile_b)
    Bp = pl.cdiv(B, tb) * tb
    xp = x if Bp == B else jnp.pad(x, ((0, Bp - B), (0, 0)))
    grid = (Bp // tb,)

    # VMEM / pipelining bookkeeping.
    w_itemsize = jnp.dtype(matmul_dtype).itemsize
    weight_bytes = (m * H + H * 2 * d2) * w_itemsize + (H + 2 * d2) * 4
    big_weights = weight_bytes > (8 << 20)
    # Constant-index weights do not need double buffering once they are big.
    wmode = pl.Buffered(1) if big_weights else None
    io_bytes = 2 * 2 * tb * D * jnp.dtype(x.dtype).itemsize      # x + z, 2-deep
    vmem_est = ((1 if big_weights else 2) * weight_bytes + io_bytes
                + 2 * tb * 4 + (2 << 20))
    vmem_limit = None if vmem_est <= (16 << 20) else min(2 * vmem_est, 96 << 20)

    flops = 2 * Bp * m * H + 2 * Bp * H * (2 * d2) + 5 * Bp * d2
    transcendentals = Bp * (H + d2)                               # tanh + exp
    bytes_accessed = (2 * Bp * D * jnp.dtype(x.dtype).itemsize    # x in, z out
                      + Bp * 4 + weight_bytes)

    kernel = functools.partial(_affine_coupling_kernel,
                               m=m, d2=d2, matmul_dtype=matmul_dtype)

    z, logdet = pl.pallas_call(
        kernel,
        out_shape=(
            jax.ShapeDtypeStruct((Bp, D), x.dtype),
            jax.ShapeDtypeStruct((1, Bp), jnp.float32),
        ),
        grid_spec=pltpu.PrefetchScalarGridSpec(
            num_scalar_prefetch=0,
            grid=grid,
            in_specs=[
                pl.BlockSpec((tb, D), lambda i: (i, 0)),            # x tile
                pl.BlockSpec((m, H), lambda i: (0, 0),
                             pipeline_mode=wmode),                  # W1
                pl.BlockSpec((1, H), lambda i: (0, 0)),              # b1
                pl.BlockSpec((H, 2 * d2), lambda i: (0, 0),
                             pipeline_mode=wmode),                  # [Ws|Wt]
                pl.BlockSpec((1, 2 * d2), lambda i: (0, 0)),         # [bs|bt]
            ],
            out_specs=(
                pl.BlockSpec((tb, D), lambda i: (i, 0)),             # z tile
                pl.BlockSpec((1, tb), lambda i: (0, i)),             # log_det row
            ),
        ),
        compiler_params=pltpu.CompilerParams(
            dimension_semantics=("parallel",),
            vmem_limit_bytes=vmem_limit),
        cost_estimate=pl.CostEstimate(
            flops=flops,
            transcendentals=transcendentals,
            bytes_accessed=bytes_accessed),
    )(xp, w1c, b1c, wst, bst)

    return z[:B], logdet[0, :B]


if __name__ == "__main__":
    # Lane-dense shapes: m = d2 = hidden = 128, batch = 256 -> 2 parallel
    # 128-row grid steps (feeds both v7x TensorCores).
    batch, dim_in, dim_out, hidden = 256, 128, 128, 128
    dim = dim_in + dim_out

    key = jax.random.PRNGKey(0)
    kx, k1, k2, k3, k4, k5, k6 = jax.random.split(key, 7)

    x = jax.random.normal(kx, (batch, dim), dtype=jnp.float32)
    w1 = 0.05 * jax.random.normal(k1, (dim_in, hidden), dtype=jnp.float32)
    b1 = 0.05 * jax.random.normal(k2, (1, hidden), dtype=jnp.float32)
    ws = 0.05 * jax.random.normal(k3, (hidden, dim_out), dtype=jnp.float32)
    bs = 0.05 * jax.random.normal(k4, (1, dim_out), dtype=jnp.float32)
    wt = 0.05 * jax.random.normal(k5, (hidden, dim_out), dtype=jnp.float32)
    bt = 0.05 * jax.random.normal(k6, (1, dim_out), dtype=jnp.float32)

    # --- f32-matmul path: exact semantics of the PyTorch module -------------
    z32, ld32 = affine_coupling_forward(x, w1, b1, ws, bs, wt, bt,
                                        matmul_dtype=jnp.float32)
    z32 = jax.block_until_ready(z32)
    ld32 = jax.block_until_ready(ld32)

    hp_dot = functools.partial(jnp.dot, precision=jax.lax.Precision.HIGHEST)
    x1_ref, x2_ref = x[:, :dim_in], x[:, dim_in:]
    h_ref = jnp.tanh(hp_dot(x1_ref, w1) + b1)
    log_s_ref = hp_dot(h_ref, ws) + bs
    t_ref = hp_dot(h_ref, wt) + bt
    z2_ref = jnp.exp(log_s_ref) * x2_ref + t_ref
    z_ref = jnp.concatenate([x1_ref, z2_ref], axis=1)
    ld_ref = jnp.sum(log_s_ref, axis=1)

    assert z32.shape == (batch, dim) and ld32.shape == (batch,)
    assert jnp.allclose(z32, z_ref, atol=1e-3, rtol=1e-3), \
        float(jnp.max(jnp.abs(z32 - z_ref)))
    assert jnp.allclose(ld32, ld_ref, atol=1e-2, rtol=1e-2), \
        float(jnp.max(jnp.abs(ld32 - ld_ref)))

    # --- bf16-matmul path (default, per perf review): validate against a
    #     reference that rounds the matmul operands the same way --------------
    zbf, ldbf = affine_coupling_forward(x, w1, b1, ws, bs, wt, bt)
    zbf = jax.block_until_ready(zbf)
    ldbf = jax.block_until_ready(ldbf)

    bf = jnp.bfloat16
    h_b = jnp.tanh(jnp.dot(x1_ref.astype(bf), w1.astype(bf),
                           preferred_element_type=jnp.float32) + b1)
    log_s_b = jnp.dot(h_b.astype(bf), ws.astype(bf),
                      preferred_element_type=jnp.float32) + bs
    t_b = jnp.dot(h_b.astype(bf), wt.astype(bf),
                  preferred_element_type=jnp.float32) + bt
    z_b = jnp.concatenate([x1_ref, jnp.exp(log_s_b) * x2_ref + t_b], axis=1)
    ld_b = jnp.sum(log_s_b, axis=1)

    assert jnp.allclose(zbf, z_b, atol=5e-3, rtol=5e-3), \
        float(jnp.max(jnp.abs(zbf - z_b)))
    assert jnp.allclose(ldbf, ld_b, atol=5e-2, rtol=5e-2), \
        float(jnp.max(jnp.abs(ldbf - ld_b)))

    print("KERNEL_OK")
</pallas_src>

<mosaic_0001>
module attributes {stable_mosaic.version = 11 : i64} {
  func.func @_affine_coupling_kernel(%arg0: i32, %arg1: memref<128x256xf32, #tpu.memory_space<vmem>>, %arg2: memref<128x128xf32, #tpu.memory_space<vmem>>, %arg3: memref<1x128xf32, #tpu.memory_space<vmem>>, %arg4: memref<128x256xf32, #tpu.memory_space<vmem>>, %arg5: memref<1x256xf32, #tpu.memory_space<vmem>>, %arg6: memref<128x256xf32, #tpu.memory_space<vmem>>, %arg7: memref<1x128xf32, #tpu.memory_space<vmem>>) attributes {dimension_semantics = [#tpu.dimension_semantics<parallel>], iteration_bounds = array<i64: 2>, scalar_prefetch = 0 : i64, scratch_operands = 0 : i64, tpu.core_type = #tpu.core_type<tc>, window_params = [{transform_indices = @transform_0, window_bounds = array<i64: 128, 256>}, {pipeline_mode = #tpu.pipeline_mode<synchronous>, transform_indices = @transform_1, window_bounds = array<i64: 128, 128>}, {pipeline_mode = #tpu.pipeline_mode<synchronous>, transform_indices = @transform_2, window_bounds = array<i64: 1, 128>}, {pipeline_mode = #tpu.pipeline_mode<synchronous>, transform_indices = @transform_3, window_bounds = array<i64: 128, 256>}, {pipeline_mode = #tpu.pipeline_mode<synchronous>, transform_indices = @transform_4, window_bounds = array<i64: 1, 256>}, {transform_indices = @transform_5, window_bounds = array<i64: 128, 256>}, {transform_indices = @transform_6, window_bounds = array<i64: 1, 128>}]} {
    %c0 = arith.constant 0 : index
    %c0_0 = arith.constant 0 : index
    %0 = vector.load %arg1[%c0, %c0_0] : memref<128x256xf32, #tpu.memory_space<vmem>>, vector<128x256xf32>
    %1 = vector.extract_strided_slice %0 {offsets = [0, 0], sizes = [128, 128], strides = [1, 1]} : vector<128x256xf32> to vector<128x128xf32>
    %2 = vector.extract_strided_slice %0 {offsets = [0, 128], sizes = [128, 128], strides = [1, 1]} : vector<128x256xf32> to vector<128x128xf32>
    %c0_1 = arith.constant 0 : index
    %c0_2 = arith.constant 0 : index
    %3 = vector.load %arg2[%c0_1, %c0_2] : memref<128x128xf32, #tpu.memory_space<vmem>>, vector<128x128xf32>
    %cst = arith.constant dense<0.000000e+00> : vector<128x128xf32>
    %4 = tpu.matmul %1, %3, %cst {dimension_numbers = #tpu.dot_dimension_numbers<[1], [0], [0], [1], [0, 0, 1, 1], [], []>} : vector<128x128xf32>, vector<128x128xf32>, vector<128x128xf32> -> vector<128x128xf32>
    %c0_3 = arith.constant 0 : index
    %c0_4 = arith.constant 0 : index
    %5 = vector.load %arg3[%c0_3, %c0_4] : memref<1x128xf32, #tpu.memory_space<vmem>>, vector<1x128xf32>
    %6 = vector.broadcast %5 : vector<1x128xf32> to vector<128x128xf32>
    %7 = arith.addf %4, %6 : vector<128x128xf32>
    %8 = math.tanh %7 : vector<128x128xf32>
    %c0_5 = arith.constant 0 : index
    %c0_6 = arith.constant 0 : index
    %9 = vector.load %arg4[%c0_5, %c0_6] : memref<128x256xf32, #tpu.memory_space<vmem>>, vector<128x256xf32>
    %cst_7 = arith.constant dense<0.000000e+00> : vector<128x256xf32>
    %10 = tpu.matmul %8, %9, %cst_7 {dimension_numbers = #tpu.dot_dimension_numbers<[1], [0], [0], [1], [0, 0, 1, 1], [], []>} : vector<128x128xf32>, vector<128x256xf32>, vector<128x256xf32> -> vector<128x256xf32>
    %c0_8 = arith.constant 0 : index
    %c0_9 = arith.constant 0 : index
    %11 = vector.load %arg5[%c0_8, %c0_9] : memref<1x256xf32, #tpu.memory_space<vmem>>, vector<1x256xf32>
    %12 = vector.broadcast %11 : vector<1x256xf32> to vector<128x256xf32>
    %13 = arith.addf %10, %12 : vector<128x256xf32>
    %14 = vector.extract_strided_slice %13 {offsets = [0, 0], sizes = [128, 128], strides = [1, 1]} : vector<128x256xf32> to vector<128x128xf32>
    %15 = vector.extract_strided_slice %13 {offsets = [0, 128], sizes = [128, 128], strides = [1, 1]} : vector<128x256xf32> to vector<128x128xf32>
    %c0_10 = arith.constant 0 : index
    %c0_11 = arith.constant 0 : index
    %16 = vector.load %arg6[%c0_10, %c0_11] : memref<128x256xf32, #tpu.memory_space<vmem>>, vector<128x128xf32>
    tpu.vector_store %arg6[%c0_10, %c0_11], %1 {strides = array<i32>} : memref<128x256xf32, #tpu.memory_space<vmem>>, vector<128x128xf32>,
    %17 = math.exp %14 : vector<128x128xf32>
    %18 = arith.mulf %17, %2 : vector<128x128xf32>
    %19 = arith.addf %18, %15 : vector<128x128xf32>
    %c0_12 = arith.constant 0 : index
    %c128 = arith.constant 128 : index
    %20 = vector.load %arg6[%c0_12, %c128] : memref<128x256xf32, #tpu.memory_space<vmem>>, vector<128x128xf32>
    tpu.vector_store %arg6[%c0_12, %c128], %19 {strides = array<i32>} : memref<128x256xf32, #tpu.memory_space<vmem>>, vector<128x128xf32>,
    %21 = tpu.transpose %14, [1, 0] : vector<128x128xf32> -> vector<128x128xf32>
    %cst_13 = arith.constant dense<0.000000e+00> : vector<128xf32>
    %22 = vector.multi_reduction <add>, %21, %cst_13 [0] : vector<128x128xf32> to vector<128xf32>
    %23 = vector.shape_cast %22 : vector<128xf32> to vector<1x128xf32>
    %c0_14 = arith.constant 0 : index
    %c0_15 = arith.constant 0 : index
    %24 = vector.load %arg7[%c0_14, %c0_15] : memref<1x128xf32, #tpu.memory_space<vmem>>, vector<1x128xf32>
    tpu.vector_store %arg7[%c0_14, %c0_15], %23 {strides = array<i32>} : memref<1x128xf32, #tpu.memory_space<vmem>>, vector<1x128xf32>,
    return
  }
  func.func @transform_0(%arg0: i32) -> (i32, i32) {
    %c0_i32 = arith.constant 0 : i32
    %c0_i32_0 = arith.constant 0 : i32
    return %arg0, %c0_i32 : i32, i32
  }
  func.func @transform_1(%arg0: i32) -> (i32, i32) {
    %c0_i32 = arith.constant 0 : i32
    %c0_i32_0 = arith.constant 0 : i32
    %c0_i32_1 = arith.constant 0 : i32
    return %c0_i32, %c0_i32_0 : i32, i32
  }
  func.func @transform_2(%arg0: i32) -> (i32, i32) {
    %c0_i32 = arith.constant 0 : i32
    %c0_i32_0 = arith.constant 0 : i32
    %c0_i32_1 = arith.constant 0 : i32
    return %c0_i32, %c0_i32_0 : i32, i32
  }
  func.func @transform_3(%arg0: i32) -> (i32, i32) {
    %c0_i32 = arith.constant 0 : i32
    %c0_i32_0 = arith.constant 0 : i32
    %c0_i32_1 = arith.constant 0 : i32
    return %c0_i32, %c0_i32_0 : i32, i32
  }
  func.func @transform_4(%arg0: i32) -> (i32, i32) {
    %c0_i32 = arith.constant 0 : i32
    %c0_i32_0 = arith.constant 0 : i32
    %c0_i32_1 = arith.constant 0 : i32
    return %c0_i32, %c0_i32_0 : i32, i32
  }
  func.func @transform_5(%arg0: i32) -> (i32, i32) {
    %c0_i32 = arith.constant 0 : i32
    %c0_i32_0 = arith.constant 0 : i32
    return %arg0, %c0_i32 : i32, i32
  }
  func.func @transform_6(%arg0: i32) -> (i32, i32) {
    %c0_i32 = arith.constant 0 : i32
    %c0_i32_0 = arith.constant 0 : i32
    return %c0_i32, %arg0 : i32, i32
  }
}

</mosaic_0001>

<llo_original>
// kernel: tpu_custom_call.1
$region0: #{tpu_custom_call.1}
  #allocation0 [shape = 'u32[]', space=smem, size = 0x4, offset = 0x4, fixed_abs, tag = 'smem constant byte address 0x4 - core index']
  #allocation1 [shape = 'u32[144,128]{1,0:T(1,128)}', space=vmem, size = 0x12000, scoped, tag = 'internal scratch']
  %s0 = inlined_call_operand.hbm [shape: f32[256,256], index: 0, kind: input, shape index: {}]
  %s1 = inlined_call_operand.hbm [shape: f32[128,128], index: 1, kind: input, shape index: {}]
  %s2 = inlined_call_operand.vmem [shape: f32[1,128], index: 2, kind: input, shape index: {}]
  %s3 = inlined_call_operand.hbm [shape: f32[128,256], index: 3, kind: input, shape index: {}]
  %s4 = inlined_call_operand.vmem [shape: f32[1,256], index: 4, kind: input, shape index: {}]
  %s5 = inlined_call_operand.hbm [shape: f32[256,256], index: 5, kind: output, shape index: {0}]
  %s6 = inlined_call_operand.hbm [shape: f32[1,256], index: 6, kind: output, shape index: {1}]
  %7 = xla_tuple %s5, %s6
  %s8 = sld [smem:[#allocation0]]
  $region73: #{tpu_custom_call.1} parent=0
    _
  %s10 = ssub.s32 1, %s8
  %s11 = scalar_select 0, %s10, %s8
  $region1: #{tpu_custom_call.1} parent=0
    #allocation2 [shape = 'u8[262144]{0}', space=vmem, size = 0x40000, scoped, tag = 'input window, operand 0']
    #allocation3 [shape = 's32[2]{0}', space=sflag, size = 0x8, scoped, tag = 'scoped memory for tpu_custom_call.1']
    #allocation4 [shape = 's32[2]{0}', space=sflag, size = 0x8, scoped, tag = 'scoped memory for tpu_custom_call.1']
    #allocation5 [shape = 'u8[65536]{0}', space=vmem, size = 0x10000, scoped, tag = 'input window, operand 1, single buffered']
    #allocation6 [shape = 's32[1]{0}', space=sflag, size = 0x4, scoped, tag = 'scoped memory for tpu_custom_call.1']
    #allocation7 [shape = 'u8[131072]{0}', space=vmem, size = 0x20000, scoped, tag = 'input window, operand 3, single buffered']
    #allocation8 [shape = 'u8[262144]{0}', space=vmem, size = 0x40000, scoped, tag = 'output window, operand 0']
    #allocation9 [shape = 'u8[1024]{0}', space=vmem, size = 0x400, scoped, tag = 'output window, operand 1']
    #allocation10 [shape = 's32[2]{0}', space=sflag, size = 0x8, scoped, tag = 'scoped memory for tpu_custom_call.1']
    %12 = vsyncpa [#allocation3], 0
    %s13 = scalar_lea.sflag [#allocation3], 1
    %14 = vsyncpa %s13, 0
    %15 = vsyncpa [#allocation6], 0
    %16 = vsyncpa [#allocation4], 0
    %s17 = scalar_lea.sflag [#allocation4], 1
    %18 = vsyncpa %s17, 0
    %19 = vsyncpa [#allocation10], 0
    %s20 = scalar_lea.sflag [#allocation10], 1
    %21 = vsyncpa %s20, 0
    loop: start=0, step=1, limit=4
    $region2: #{tpu_custom_call.1} parent=1 // loop_pre_header
      _
    $region3: #{tpu_custom_call.1} parent=1 // loop_header
      %s23 = sphi 0, %s27
      %p24 = scmp.ge.s32.totalorder %s23, 4
      %s33 = sphi 0, %s35
      %s36 = sphi 0, %s33
      %s37 = sphi 0, %s36
      %s53 = sphi 0, %s37
      %s57 = sphi 0, %s57
      %s59 = sphi 0, %s57
      %s60 = sphi 0, %s59
      %s74 = sphi 0, %s60
      %s78 = sphi 0, %s78
      %s80 = sphi 0, %s78
      %s81 = sphi 0, %s80
      %s95 = sphi 0, %s81
      %s99 = sphi 0, %s99
      %s101 = sphi 0, %s99
      %s102 = sphi 0, %s101
      %s116 = sphi 0, %s102
      %s120 = sphi 0, %s120
      %s122 = sphi 0, %s120
      %s123 = sphi 0, %s122
      %s137 = sphi 0, %s123
      %s143 = sphi 0, %s145
      %s146 = sphi 0, %s143
      %s147 = sphi 0, %s146
      %s163 = sphi 0, %s147
      %s169 = sphi 0, %s171
      %s172 = sphi 0, %s169
      %s173 = sphi 0, %s172
      %s189 = sphi 0, %s173
    $region4: #{tpu_custom_call.1} parent=1 // loop_header_branch
      %26 = sbr.rel (%p24) target = $region8
    $region5: #{tpu_custom_call.1} parent=1 // loop_body
      %s28 = ssub.s32 %s23, 1
      %s29 = ssub.s32 %s23, 2
      %s30 = sadd.s32 %s23, 1
      %s31 = ssub.s32 %s23, %s30
      %p32 = scmp.eq.s32.totalorder %s31, 0
      %s34 = sadd.s32 %s33, 1
      %s35 = scalar_select %p32, %s33, %s34
      %p38 = pneg %p32
      %p39 = scmp.eq.s32.totalorder %s23, 1
      %p40 = por %p38, %p39
      %p41 = scmp.ne.s32.totalorder %s33, %s36
      %p42 = scmp.eq.s32.totalorder %s23, 0
      %p43 = por %p41, %p42
      %p44 = scmp.ne.s32.totalorder %s33, %s36
      %p45 = scmp.eq.s32.totalorder %s28, 1
      %p46 = por %p44, %p45
      %p47 = scmp.ne.s32.totalorder %s36, %s37
      %p48 = scmp.eq.s32.totalorder %s28, 0
      %p49 = por %p47, %p48
      %p50 = scmp.ne.s32.totalorder %s36, %s37
      %p51 = scmp.eq.s32.totalorder %s29, 1
      %p52 = por %p50, %p51
      %p54 = scmp.ne.s32.totalorder %s37, %s53
      %p55 = scmp.eq.s32.totalorder %s29, 0
      %p56 = por %p54, %p55
      %s58 = sadd.s32 %s57, 1
      %p61 = scmp.eq.s32.totalorder %s23, 1
      %p62 = scmp.ne.s32.totalorder %s57, %s59
      %p63 = scmp.eq.s32.totalorder %s23, 0
      %p64 = por %p62, %p63
      %p65 = scmp.ne.s32.totalorder %s57, %s59
      %p66 = scmp.eq.s32.totalorder %s28, 1
      %p67 = por %p65, %p66
      %p68 = scmp.ne.s32.totalorder %s59, %s60
      %p69 = scmp.eq.s32.totalorder %s28, 0
      %p70 = por %p68, %p69
      %p71 = scmp.ne.s32.totalorder %s59, %s60
      %p72 = scmp.eq.s32.totalorder %s29, 1
      %p73 = por %p71, %p72
      %p75 = scmp.ne.s32.totalorder %s60, %s74
      %p76 = scmp.eq.s32.totalorder %s29, 0
      %p77 = por %p75, %p76
      %s79 = sadd.s32 %s78, 1
      %p82 = scmp.eq.s32.totalorder %s23, 1
      %p83 = scmp.ne.s32.totalorder %s78, %s80
      %p84 = scmp.eq.s32.totalorder %s23, 0
      %p85 = por %p83, %p84
      %p86 = scmp.ne.s32.totalorder %s78, %s80
      %p87 = scmp.eq.s32.totalorder %s28, 1
      %p88 = por %p86, %p87
      %p89 = scmp.ne.s32.totalorder %s80, %s81
      %p90 = scmp.eq.s32.totalorder %s28, 0
      %p91 = por %p89, %p90
      %p92 = scmp.ne.s32.totalorder %s80, %s81
      %p93 = scmp.eq.s32.totalorder %s29, 1
      %p94 = por %p92, %p93
      %p96 = scmp.ne.s32.totalorder %s81, %s95
      %p97 = scmp.eq.s32.totalorder %s29, 0
      %p98 = por %p96, %p97
      %s100 = sadd.s32 %s99, 1
      %p103 = scmp.eq.s32.totalorder %s23, 1
      %p104 = scmp.ne.s32.totalorder %s99, %s101
      %p105 = scmp.eq.s32.totalorder %s23, 0
      %p106 = por %p104, %p105
      %p107 = scmp.ne.s32.totalorder %s99, %s101
      %p108 = scmp.eq.s32.totalorder %s28, 1
      %p109 = por %p107, %p108
      %p110 = scmp.ne.s32.totalorder %s101, %s102
      %p111 = scmp.eq.s32.totalorder %s28, 0
      %p112 = por %p110, %p111
      %p113 = scmp.ne.s32.totalorder %s101, %s102
      %p114 = scmp.eq.s32.totalorder %s29, 1
      %p115 = por %p113, %p114
      %p117 = scmp.ne.s32.totalorder %s102, %s116
      %p118 = scmp.eq.s32.totalorder %s29, 0
      %p119 = por %p117, %p118
      %s121 = sadd.s32 %s120, 1
      %p124 = scmp.eq.s32.totalorder %s23, 1
      %p125 = scmp.ne.s32.totalorder %s120, %s122
      %p126 = scmp.eq.s32.totalorder %s23, 0
      %p127 = por %p125, %p126
      %p128 = scmp.ne.s32.totalorder %s120, %s122
      %p129 = scmp.eq.s32.totalorder %s28, 1
      %p130 = por %p128, %p129
      %p131 = scmp.ne.s32.totalorder %s122, %s123
      %p132 = scmp.eq.s32.totalorder %s28, 0
      %p133 = por %p131, %p132
      %p134 = scmp.ne.s32.totalorder %s122, %s123
      %p135 = scmp.eq.s32.totalorder %s29, 1
      %p136 = por %p134, %p135
      %p138 = scmp.ne.s32.totalorder %s123, %s137
      %p139 = scmp.eq.s32.totalorder %s29, 0
      %p140 = por %p138, %p139
      %s141 = ssub.s32 %s23, %s30
      %p142 = scmp.eq.s32.totalorder %s141, 0
      %s144 = sadd.s32 %s143, 1
      %s145 = scalar_select %p142, %s143, %s144
      %p148 = pneg %p142
      %p149 = scmp.eq.s32.totalorder %s23, 1
      %p150 = por %p148, %p149
      %p151 = scmp.ne.s32.totalorder %s143, %s146
      %p152 = scmp.eq.s32.totalorder %s23, 0
      %p153 = por %p151, %p152
      %p154 = scmp.ne.s32.totalorder %s143, %s146
      %p155 = scmp.eq.s32.totalorder %s28, 1
      %p156 = por %p154, %p155
      %p157 = scmp.ne.s32.totalorder %s146, %s147
      %p158 = scmp.eq.s32.totalorder %s28, 0
      %p159 = por %p157, %p158
      %p160 = scmp.ne.s32.totalorder %s146, %s147
      %p161 = scmp.eq.s32.totalorder %s29, 1
      %p162 = por %p160, %p161
      %p164 = scmp.ne.s32.totalorder %s147, %s163
      %p165 = scmp.eq.s32.totalorder %s29, 0
      %p166 = por %p164, %p165
      %s167 = ssub.s32 %s23, %s30
      %p168 = scmp.eq.s32.totalorder %s167, 0
      %s170 = sadd.s32 %s169, 1
      %s171 = scalar_select %p168, %s169, %s170
      %p174 = pneg %p168
      %p175 = scmp.eq.s32.totalorder %s23, 1
      %p176 = por %p174, %p175
      %p177 = scmp.ne.s32.totalorder %s169, %s172
      %p178 = scmp.eq.s32.totalorder %s23, 0
      %p179 = por %p177, %p178
      %p180 = scmp.ne.s32.totalorder %s169, %s172
      %p181 = scmp.eq.s32.totalorder %s28, 1
      %p182 = por %p180, %p181
      %p183 = scmp.ne.s32.totalorder %s172, %s173
      %p184 = scmp.eq.s32.totalorder %s28, 0
      %p185 = por %p183, %p184
      %p186 = scmp.ne.s32.totalorder %s172, %s173
      %p187 = scmp.eq.s32.totalorder %s29, 1
      %p188 = por %p186, %p187
      %p190 = scmp.ne.s32.totalorder %s173, %s189
      %p191 = scmp.eq.s32.totalorder %s29, 0
      %p192 = por %p190, %p191
      %p193 = scmp.le.s32.totalorder 1, %s23
      %p194 = scmp.lt.s32.totalorder %s23, 3
      %p195 = pnand %p193, %p194
      %p196 = pneg %p195
      // Predicated region
      $region9: #{tpu_custom_call.1} parent=5 // pred_check
        _
      $region10: #{tpu_custom_call.1} parent=5 // pred_check_branch
        %198 = sbr.rel (%p195) target = $region12
      $region11: #{tpu_custom_call.1} parent=5 // pred_region
        %s199 = ssub.s32 %s23, 1
        // Predicated region
        $region13: #{tpu_custom_call.1} parent=11 // pred_check
          %p200 = pneg %p70
        $region14: #{tpu_custom_call.1} parent=11 // pred_check_branch
          %202 = sbr.rel (%p200) target = $region16
        $region15: #{tpu_custom_call.1} parent=11 // pred_region
          %s204 = ssub.s32 2048, 2048
          %205 = vsyncadd [#allocation6], %s204
          %s206 = sshll.u32 [#allocation5], 4
          %s207 = int_to_ptr.vmem [resolvable:$true] %s206
          %212 = dma.hbm_to_vmem [thread:$0]  %s1, 2048, %s207, [#allocation6], 128, 128, 8
        $region16: #{tpu_custom_call.1} parent=11 // pred_fallthru
          _
        // Predicated region
        $region17: #{tpu_custom_call.1} parent=11 // pred_check
          %p213 = pneg %p91
        $region18: #{tpu_custom_call.1} parent=11 // pred_check_branch
          %215 = sbr.rel (%p213) target = $region20
        $region19: #{tpu_custom_call.1} parent=11 // pred_region
          _
        $region20: #{tpu_custom_call.1} parent=11 // pred_fallthru
          _
        // Predicated region
        $region21: #{tpu_custom_call.1} parent=11 // pred_check
          %p216 = pneg %p112
        $region22: #{tpu_custom_call.1} parent=11 // pred_check_branch
          %218 = sbr.rel (%p216) target = $region24
        $region23: #{tpu_custom_call.1} parent=11 // pred_region
          %s220 = ssub.s32 4096, 4096
          %221 = vsyncadd [#allocation6], %s220
          %s222 = sshll.u32 [#allocation7], 4
          %s223 = int_to_ptr.vmem [resolvable:$true] %s222
          %228 = dma.hbm_to_vmem [thread:$0]  %s3, 4096, %s223, [#allocation6], 256, 256, 16
        $region24: #{tpu_custom_call.1} parent=11 // pred_fallthru
          _
        // Predicated region
        $region25: #{tpu_custom_call.1} parent=11 // pred_check
          %p229 = pneg %p133
        $region26: #{tpu_custom_call.1} parent=11 // pred_check_branch
          %231 = sbr.rel (%p229) target = $region28
        $region27: #{tpu_custom_call.1} parent=11 // pred_region
          _
        $region28: #{tpu_custom_call.1} parent=11 // pred_fallthru
          _
      $region12: #{tpu_custom_call.1} parent=5 // pred_fallthru
        _
      %p232 = scmp.lt.s32.totalorder %s23, 2
      // Predicated region
      $region29: #{tpu_custom_call.1} parent=5 // pred_check
        %p233 = pneg %p232
      $region30: #{tpu_custom_call.1} parent=5 // pred_check_branch
        %235 = sbr.rel (%p233) target = $region32
      $region31: #{tpu_custom_call.1} parent=5 // pred_region
        // Predicated region
        $region33: #{tpu_custom_call.1} parent=31 // pred_check
          %p236 = pneg %p43
        $region34: #{tpu_custom_call.1} parent=31 // pred_check_branch
          %238 = sbr.rel (%p236) target = $region36
        $region35: #{tpu_custom_call.1} parent=31 // pred_region
          %s239 = sand.u32 %s33, 1
          %s240 = scalar_lea.sflag [#allocation3], %s239
          %s241 = sand.u32 %s33, 1
          %s242 = smul.addr %s241, 256
          %s243 = scalar_lea.vmem [#allocation2], %s242
          %s244 = smul.u32 16, %s23
          %s246 = ssub.s32 4096, 4096
          %247 = vsyncadd %s240, %s246
          %s248 = smul.addr %s244, 2
          %s249 = smul.addr %s248, 128
          %s250 = scalar_lea.hbm %s0, %s249
          %s251 = sshll.u32 %s243, 4
          %s252 = int_to_ptr.vmem [resolvable:$true] %s251
          %257 = dma.hbm_to_vmem [thread:$0]  %s250, 4096, %s252, %s240, 256, 256, 16
        $region36: #{tpu_custom_call.1} parent=31 // pred_fallthru
          _
      $region32: #{tpu_custom_call.1} parent=5 // pred_fallthru
        _
      %p258 = scmp.le.s32.totalorder 1, %s23
      %p259 = scmp.lt.s32.totalorder %s23, 3
      %p260 = pnand %p258, %p259
      %p261 = pneg %p260
      // Predicated region
      $region37: #{tpu_custom_call.1} parent=5 // pred_check
        _
      $region38: #{tpu_custom_call.1} parent=5 // pred_check_branch
        %263 = sbr.rel (%p260) target = $region40
      $region39: #{tpu_custom_call.1} parent=5 // pred_region
        %s264 = ssub.s32 %s23, 1
        %s265 = sand.u32 %s36, 1
        %s266 = scalar_lea.sflag [#allocation3], %s265
        %s267 = sand.u32 %s36, 1
        %s268 = smul.addr %s267, 256
        %s269 = scalar_lea.vmem [#allocation2], %s268
        // Predicated region
        $region41: #{tpu_custom_call.1} parent=39 // pred_check
          %p270 = pneg %p49
        $region42: #{tpu_custom_call.1} parent=39 // pred_check_branch
          %272 = sbr.rel (%p270) target = $region44
        $region43: #{tpu_custom_call.1} parent=39 // pred_region
          %273 = dma.done %s266, 4096
        $region44: #{tpu_custom_call.1} parent=39 // pred_fallthru
          _
        // Predicated region
        $region45: #{tpu_custom_call.1} parent=39 // pred_check
          %p274 = pneg %p70
        $region46: #{tpu_custom_call.1} parent=39 // pred_check_branch
          %276 = sbr.rel (%p274) target = $region48
        $region47: #{tpu_custom_call.1} parent=39 // pred_region
          %277 = dma.done [#allocation6], 2048
        $region48: #{tpu_custom_call.1} parent=39 // pred_fallthru
          _
        // Predicated region
        $region49: #{tpu_custom_call.1} parent=39 // pred_check
          %p278 = pneg %p112
        $region50: #{tpu_custom_call.1} parent=39 // pred_check_branch
          %280 = sbr.rel (%p278) target = $region52
        $region51: #{tpu_custom_call.1} parent=39 // pred_region
          %281 = dma.done [#allocation6], 4096
        $region52: #{tpu_custom_call.1} parent=39 // pred_fallthru
          _
        %s282 = sand.u32 %s36, 1
        %s283 = scalar_lea.sflag [#allocation3], %s282
        %s284 = sand.u32 %s36, 1
        %s285 = smul.addr %s284, 256
        %s286 = scalar_lea.vmem [#allocation2], %s285
        %p287 = pneg %p49
        %p288 = pneg %p46
        %p289 = pneg %p70
        %p290 = pneg %p67
        %p291 = pneg %p91
        %p292 = pneg %p88
        %p293 = pneg %p112
        %p294 = pneg %p109
        %p295 = pneg %p133
        %p296 = pneg %p130
        %p297 = pneg %p159
        %p298 = pneg %p156
        %s299 = sand.u32 %s146, 1
        %s300 = scalar_lea.sflag [#allocation4], %s299
        %s301 = sand.u32 %s146, 1
        %s302 = smul.addr %s301, 256
        %s303 = scalar_lea.vmem [#allocation8], %s302
        %p304 = pneg %p185
        %p305 = pneg %p182
        %s306 = sand.u32 %s172, 1
        %s307 = scalar_lea.sflag [#allocation10], %s306
        %s308 = sand.u32 %s172, 1
        %s309 = scalar_lea.vmem [#allocation9], %s308
        %s310 = smul.u32 16, %s28
        %s311 = smul.u32 16, %s28
        %v312 = vld [vmem:[%s269] sm:$0xff]
        %v313 = vld [vmem:[%s269 + $0x8] sm:$0xff]
        %v314 = vld [vmem:[%s269 + $0x10] sm:$0xff]
        %v315 = vld [vmem:[%s269 + $0x18] sm:$0xff]
        %v316 = vld [vmem:[%s269 + $0x20] sm:$0xff]
        %v317 = vld [vmem:[%s269 + $0x28] sm:$0xff]
        %v318 = vld [vmem:[%s269 + $0x30] sm:$0xff]
        %v319 = vld [vmem:[%s269 + $0x38] sm:$0xff]
        %v320 = vld [vmem:[%s269 + $0x40] sm:$0xff]
        %v321 = vld [vmem:[%s269 + $0x48] sm:$0xff]
        %v322 = vld [vmem:[%s269 + $0x50] sm:$0xff]
        %v323 = vld [vmem:[%s269 + $0x58] sm:$0xff]
        %v324 = vld [vmem:[%s269 + $0x60] sm:$0xff]
        %v325 = vld [vmem:[%s269 + $0x68] sm:$0xff]
        %v326 = vld [vmem:[%s269 + $0x70] sm:$0xff]
        %v327 = vld [vmem:[%s269 + $0x78] sm:$0xff]
        %v328 = vld [vmem:[%s269 + $0x80] sm:$0xff]
        %v329 = vld [vmem:[%s269 + $0x88] sm:$0xff]
        %v330 = vld [vmem:[%s269 + $0x90] sm:$0xff]
        %v331 = vld [vmem:[%s269 + $0x98] sm:$0xff]
        %v332 = vld [vmem:[%s269 + $0xa0] sm:$0xff]
        %v333 = vld [vmem:[%s269 + $0xa8] sm:$0xff]
        %v334 = vld [vmem:[%s269 + $0xb0] sm:$0xff]
        %v335 = vld [vmem:[%s269 + $0xb8] sm:$0xff]
        %v336 = vld [vmem:[%s269 + $0xc0] sm:$0xff]
        %v337 = vld [vmem:[%s269 + $0xc8] sm:$0xff]
        %v338 = vld [vmem:[%s269 + $0xd0] sm:$0xff]
        %v339 = vld [vmem:[%s269 + $0xd8] sm:$0xff]
        %v340 = vld [vmem:[%s269 + $0xe0] sm:$0xff]
        %v341 = vld [vmem:[%s269 + $0xe8] sm:$0xff]
        %v342 = vld [vmem:[%s269 + $0xf0] sm:$0xff]
        %v343 = vld [vmem:[%s269 + $0xf8] sm:$0xff]
        %v344 = vld [vmem:[#allocation5] sm:$0xff]
        %v345 = vld [vmem:[#allocation5 + $0x8] sm:$0xff]
        %v346 = vld [vmem:[#allocation5 + $0x10] sm:$0xff]
        %v347 = vld [vmem:[#allocation5 + $0x18] sm:$0xff]
        %v348 = vld [vmem:[#allocation5 + $0x20] sm:$0xff]
        %v349 = vld [vmem:[#allocation5 + $0x28] sm:$0xff]
        %v350 = vld [vmem:[#allocation5 + $0x30] sm:$0xff]
        %v351 = vld [vmem:[#allocation5 + $0x38] sm:$0xff]
        %v352 = vld [vmem:[#allocation5 + $0x40] sm:$0xff]
        %v353 = vld [vmem:[#allocation5 + $0x48] sm:$0xff]
        %v354 = vld [vmem:[#allocation5 + $0x50] sm:$0xff]
        %v355 = vld [vmem:[#allocation5 + $0x58] sm:$0xff]
        %v356 = vld [vmem:[#allocation5 + $0x60] sm:$0xff]
        %v357 = vld [vmem:[#allocation5 + $0x68] sm:$0xff]
        %v358 = vld [vmem:[#allocation5 + $0x70] sm:$0xff]
        %v359 = vld [vmem:[#allocation5 + $0x78] sm:$0xff]
        %v360 = vld [vmem:[%s2] sm:$0x1]
        %v362 = vlaneseq
        %v363 = vshrl.u32 %v362, 7
        %v364 = vsub.s32 0, %v363
        %v365 = vrot.slane %v360, %v364
        %367 = vmatprep.subr.mxu0 0.0
        %368 = vmatpush1.msra.mxu0 %v359
        %369 = vmatprep.subr.mxu0 0.0
        %370 = vmatpush1.msra.mxu0 %v358
        %371 = vmatprep.subr.mxu0 0.0
        %372 = vmatpush1.msra.mxu0 %v357
        %373 = vmatprep.subr.mxu0 0.0
        %374 = vmatpush1.msra.mxu0 %v356
        %375 = vmatprep.subr.mxu0 0.0
        %376 = vmatpush1.msra.mxu0 %v355
        %377 = vmatprep.subr.mxu0 0.0
        %378 = vmatpush1.msra.mxu0 %v354
        %379 = vmatprep.subr.mxu0 0.0
        %380 = vmatpush1.msra.mxu0 %v353
        %381 = vmatprep.subr.mxu0 0.0
        %382 = vmatpush1.msra.mxu0 %v352
        %383 = vmatprep.subr.mxu0 0.0
        %384 = vmatpush1.msra.mxu0 %v351
        %385 = vmatprep.subr.mxu0 0.0
        %386 = vmatpush1.msra.mxu0 %v350
        %387 = vmatprep.subr.mxu0 0.0
        %388 = vmatpush1.msra.mxu0 %v349
        %389 = vmatprep.subr.mxu0 0.0
        %390 = vmatpush1.msra.mxu0 %v348
        %391 = vmatprep.subr.mxu0 0.0
        %392 = vmatpush1.msra.mxu0 %v347
        %393 = vmatprep.subr.mxu0 0.0
        %394 = vmatpush1.msra.mxu0 %v346
        %395 = vmatprep.subr.mxu0 0.0
        %396 = vmatpush1.msra.mxu0 %v345
        %397 = vmatprep.subr.mxu0 0.0
        %398 = vmatpush1.msra.mxu0 %v344
        %399 = vmatprep.subr.mxu0 0.0
        %400 = vmatpush2.msra.mxu0 0.0
        %401 = vmatprep.subr.mxu0 0.0
        %402 = vmatpush2.msra.mxu0 0.0
        %403 = vmatprep.subr.mxu0 0.0
        %404 = vmatpush2.msra.mxu0 0.0
        %405 = vmatprep.subr.mxu0 0.0
        %406 = vmatpush2.msra.mxu0 0.0
        %407 = vmatprep.subr.mxu0 0.0
        %408 = vmatpush2.msra.mxu0 0.0
        %409 = vmatprep.subr.mxu0 0.0
        %410 = vmatpush2.msra.mxu0 0.0
        %411 = vmatprep.subr.mxu0 0.0
        %412 = vmatpush2.msra.mxu0 0.0
        %413 = vmatprep.subr.mxu0 0.0
        %414 = vmatpush2.msra.mxu0 0.0
        %415 = vmatprep.subr.mxu0 0.0
        %416 = vmatpush2.msra.mxu0 0.0
        %417 = vmatprep.subr.mxu0 0.0
        %418 = vmatpush2.msra.mxu0 0.0
        %419 = vmatprep.subr.mxu0 0.0
        %420 = vmatpush2.msra.mxu0 0.0
        %421 = vmatprep.subr.mxu0 0.0
        %422 = vmatpush2.msra.mxu0 0.0
        %423 = vmatprep.subr.mxu0 0.0
        %424 = vmatpush2.msra.mxu0 0.0
        %425 = vmatprep.subr.mxu0 0.0
        %426 = vmatpush2.msra.mxu0 0.0
        %427 = vmatprep.subr.mxu0 0.0
        %428 = vmatpush2.msra.mxu0 0.0
        %429 = vmatprep.subr.mxu0 0.0
        %430 = vmatpush2.msra.mxu0 0.0
        %431 = vmatprep.mubr.f32.mxu0 0.0
        %432 = vmatmul.mubr.f32.gmra.mxu0 %v312
        %v433 = vpop.f32.mrf.mxu0
        %v434 = vadd.f32 %v365, %v433
        %v435 = vpop.f32.mrf.mxu0
        %436 = vmatprep.mubr.f32.mxu0 0.0
        %437 = vmatmul.mubr.f32.gmra.mxu0 %v314
        %v438 = vpop.f32.mrf.mxu0
        %v439 = vadd.f32 %v365, %v438
        %v440 = vpop.f32.mrf.mxu0
        %441 = vmatprep.mubr.f32.mxu0 0.0
        %442 = vmatmul.mubr.f32.gmra.mxu0 %v316
        %v443 = vpop.f32.mrf.mxu0
        %v444 = vadd.f32 %v365, %v443
        %v445 = vpop.f32.mrf.mxu0
        %446 = vmatprep.mubr.f32.mxu0 0.0
        %447 = vmatmul.mubr.f32.gmra.mxu0 %v318
        %v448 = vpop.f32.mrf.mxu0
        %v449 = vadd.f32 %v365, %v448
        %v450 = vpop.f32.mrf.mxu0
        %451 = vmatprep.mubr.f32.mxu0 0.0
        %452 = vmatmul.mubr.f32.gmra.mxu0 %v320
        %v453 = vpop.f32.mrf.mxu0
        %v454 = vadd.f32 %v365, %v453
        %v455 = vpop.f32.mrf.mxu0
        %456 = vmatprep.mubr.f32.mxu0 0.0
        %457 = vmatmul.mubr.f32.gmra.mxu0 %v322
        %v458 = vpop.f32.mrf.mxu0
        %v459 = vadd.f32 %v365, %v458
        %v460 = vpop.f32.mrf.mxu0
        %461 = vmatprep.mubr.f32.mxu0 0.0
        %462 = vmatmul.mubr.f32.gmra.mxu0 %v324
        %v463 = vpop.f32.mrf.mxu0
        %v464 = vadd.f32 %v365, %v463
        %v465 = vpop.f32.mrf.mxu0
        %466 = vmatprep.mubr.f32.mxu0 0.0
        %467 = vmatmul.mubr.f32.gmra.mxu0 %v326
        %v468 = vpop.f32.mrf.mxu0
        %v469 = vadd.f32 %v365, %v468
        %v470 = vpop.f32.mrf.mxu0
        %471 = vmatprep.mubr.f32.mxu0 0.0
        %472 = vmatmul.mubr.f32.gmra.mxu0 %v328
        %v473 = vpop.f32.mrf.mxu0
        %v474 = vadd.f32 %v365, %v473
        %v475 = vpop.f32.mrf.mxu0
        %476 = vmatprep.mubr.f32.mxu0 0.0
        %477 = vmatmul.mubr.f32.gmra.mxu0 %v330
        %v478 = vpop.f32.mrf.mxu0
        %v479 = vadd.f32 %v365, %v478
        %v480 = vpop.f32.mrf.mxu0
        %481 = vmatprep.mubr.f32.mxu0 0.0
        %482 = vmatmul.mubr.f32.gmra.mxu0 %v332
        %v483 = vpop.f32.mrf.mxu0
        %v484 = vadd.f32 %v365, %v483
        %v485 = vpop.f32.mrf.mxu0
        %486 = vmatprep.mubr.f32.mxu0 0.0
        %487 = vmatmul.mubr.f32.gmra.mxu0 %v334
        %v488 = vpop.f32.mrf.mxu0
        %v489 = vadd.f32 %v365, %v488
        %v490 = vpop.f32.mrf.mxu0
        %491 = vmatprep.mubr.f32.mxu0 0.0
        %492 = vmatmul.mubr.f32.gmra.mxu0 %v336
        %v493 = vpop.f32.mrf.mxu0
        %v494 = vadd.f32 %v365, %v493
        %v495 = vpop.f32.mrf.mxu0
        %496 = vmatprep.mubr.f32.mxu0 0.0
        %497 = vmatmul.mubr.f32.gmra.mxu0 %v338
        %v498 = vpop.f32.mrf.mxu0
        %v499 = vadd.f32 %v365, %v498
        %v500 = vpop.f32.mrf.mxu0
        %501 = vmatprep.mubr.f32.mxu0 0.0
        %502 = vmatmul.mubr.f32.gmra.mxu0 %v340
        %v503 = vpop.f32.mrf.mxu0
        %v504 = vadd.f32 %v365, %v503
        %v505 = vpop.f32.mrf.mxu0
        %506 = vmatprep.mubr.f32.mxu0 0.0
        %507 = vmatmul.mubr.f32.gmra.mxu0 %v342
        %v508 = vpop.f32.mrf.mxu0
        %v509 = vadd.f32 %v365, %v508
        %v510 = vpop.f32.mrf.mxu0
        %511 = vdwg.mxu0
        %v512 = vtanh.pop %v434
        %v513 = vtanh.pop %v439
        %v514 = vtanh.pop %v444
        %v515 = vtanh.pop %v449
        %v516 = vtanh.pop %v454
        %v517 = vtanh.pop %v459
        %v518 = vtanh.pop %v464
        %v519 = vtanh.pop %v469
        %v520 = vtanh.pop %v474
        %v521 = vtanh.pop %v479
        %v522 = vtanh.pop %v484
        %v523 = vtanh.pop %v489
        %v524 = vtanh.pop %v494
        %v525 = vtanh.pop %v499
        %v526 = vtanh.pop %v504
        %v527 = vtanh.pop %v509
        %v528 = vld [vmem:[#allocation7] sm:$0xff]
        %v529 = vld [vmem:[#allocation7 + $0x8] sm:$0xff]
        %v530 = vld [vmem:[#allocation7 + $0x10] sm:$0xff]
        %v531 = vld [vmem:[#allocation7 + $0x18] sm:$0xff]
        %v532 = vld [vmem:[#allocation7 + $0x20] sm:$0xff]
        %v533 = vld [vmem:[#allocation7 + $0x28] sm:$0xff]
        %v534 = vld [vmem:[#allocation7 + $0x30] sm:$0xff]
        %v535 = vld [vmem:[#allocation7 + $0x38] sm:$0xff]
        %v536 = vld [vmem:[#allocation7 + $0x40] sm:$0xff]
        %v537 = vld [vmem:[#allocation7 + $0x48] sm:$0xff]
        %v538 = vld [vmem:[#allocation7 + $0x50] sm:$0xff]
        %v539 = vld [vmem:[#allocation7 + $0x58] sm:$0xff]
        %v540 = vld [vmem:[#allocation7 + $0x60] sm:$0xff]
        %v541 = vld [vmem:[#allocation7 + $0x68] sm:$0xff]
        %v542 = vld [vmem:[#allocation7 + $0x70] sm:$0xff]
        %v543 = vld [vmem:[#allocation7 + $0x78] sm:$0xff]
        %v544 = vld [vmem:[#allocation7 + $0x80] sm:$0xff]
        %v545 = vld [vmem:[#allocation7 + $0x88] sm:$0xff]
        %v546 = vld [vmem:[#allocation7 + $0x90] sm:$0xff]
        %v547 = vld [vmem:[#allocation7 + $0x98] sm:$0xff]
        %v548 = vld [vmem:[#allocation7 + $0xa0] sm:$0xff]
        %v549 = vld [vmem:[#allocation7 + $0xa8] sm:$0xff]
        %v550 = vld [vmem:[#allocation7 + $0xb0] sm:$0xff]
        %v551 = vld [vmem:[#allocation7 + $0xb8] sm:$0xff]
        %v552 = vld [vmem:[#allocation7 + $0xc0] sm:$0xff]
        %v553 = vld [vmem:[#allocation7 + $0xc8] sm:$0xff]
        %v554 = vld [vmem:[#allocation7 + $0xd0] sm:$0xff]
        %v555 = vld [vmem:[#allocation7 + $0xd8] sm:$0xff]
        %v556 = vld [vmem:[#allocation7 + $0xe0] sm:$0xff]
        %v557 = vld [vmem:[#allocation7 + $0xe8] sm:$0xff]
        %v558 = vld [vmem:[#allocation7 + $0xf0] sm:$0xff]
        %v559 = vld [vmem:[#allocation7 + $0xf8] sm:$0xff]
        %v560 = vld [vmem:[%s4] sm:$0x3]
        %v562 = vlaneseq
        %v563 = vshrl.u32 %v562, 7
        %v564 = vsub.s32 0, %v563
        %v565 = vrot.slane %v560, %v564
        %v566 = vlaneseq
        %v567 = vshrl.u32 %v566, 7
        %v568 = vsub.s32 1, %v567
        %v569 = vrot.slane %v560, %v568
        %572 = vmatprep.subr.mxu0 %v559
        %573 = vmatpush1.msra.mxu0 %v558
        %574 = vmatprep.subr.mxu0 %v557
        %575 = vmatpush1.msra.mxu0 %v556
        %576 = vmatprep.subr.mxu0 %v555
        %577 = vmatpush1.msra.mxu0 %v554
        %578 = vmatprep.subr.mxu0 %v553
        %579 = vmatpush1.msra.mxu0 %v552
        %580 = vmatprep.subr.mxu0 %v551
        %581 = vmatpush1.msra.mxu0 %v550
        %582 = vmatprep.subr.mxu0 %v549
        %583 = vmatpush1.msra.mxu0 %v548
        %584 = vmatprep.subr.mxu0 %v547
        %585 = vmatpush1.msra.mxu0 %v546
        %586 = vmatprep.subr.mxu0 %v545
        %587 = vmatpush1.msra.mxu0 %v544
        %588 = vmatprep.subr.mxu0 %v543
        %589 = vmatpush1.msra.mxu0 %v542
        %590 = vmatprep.subr.mxu0 %v541
        %591 = vmatpush1.msra.mxu0 %v540
        %592 = vmatprep.subr.mxu0 %v539
        %593 = vmatpush1.msra.mxu0 %v538
        %594 = vmatprep.subr.mxu0 %v537
        %595 = vmatpush1.msra.mxu0 %v536
        %596 = vmatprep.subr.mxu0 %v535
        %597 = vmatpush1.msra.mxu0 %v534
        %598 = vmatprep.subr.mxu0 %v533
        %599 = vmatpush1.msra.mxu0 %v532
        %600 = vmatprep.subr.mxu0 %v531
        %601 = vmatpush1.msra.mxu0 %v530
        %602 = vmatprep.subr.mxu0 %v529
        %603 = vmatpush1.msra.mxu0 %v528
        %604 = vmatprep.subr.mxu0 0.0
        %605 = vmatpush2.msra.mxu0 0.0
        %606 = vmatprep.subr.mxu0 0.0
        %607 = vmatpush2.msra.mxu0 0.0
        %608 = vmatprep.subr.mxu0 0.0
        %609 = vmatpush2.msra.mxu0 0.0
        %610 = vmatprep.subr.mxu0 0.0
        %611 = vmatpush2.msra.mxu0 0.0
        %612 = vmatprep.subr.mxu0 0.0
        %613 = vmatpush2.msra.mxu0 0.0
        %614 = vmatprep.subr.mxu0 0.0
        %615 = vmatpush2.msra.mxu0 0.0
        %616 = vmatprep.subr.mxu0 0.0
        %617 = vmatpush2.msra.mxu0 0.0
        %618 = vmatprep.subr.mxu0 0.0
        %619 = vmatpush2.msra.mxu0 0.0
        %620 = vmatprep.subr.mxu0 0.0
        %621 = vmatpush2.msra.mxu0 0.0
        %622 = vmatprep.subr.mxu0 0.0
        %623 = vmatpush2.msra.mxu0 0.0
        %624 = vmatprep.subr.mxu0 0.0
        %625 = vmatpush2.msra.mxu0 0.0
        %626 = vmatprep.subr.mxu0 0.0
        %627 = vmatpush2.msra.mxu0 0.0
        %628 = vmatprep.subr.mxu0 0.0
        %629 = vmatpush2.msra.mxu0 0.0
        %630 = vmatprep.subr.mxu0 0.0
        %631 = vmatpush2.msra.mxu0 0.0
        %632 = vmatprep.subr.mxu0 0.0
        %633 = vmatpush2.msra.mxu0 0.0
        %634 = vmatprep.subr.mxu0 0.0
        %635 = vmatpush2.msra.mxu0 0.0
        %636 = vmatprep.mubr.f32.mxu0 0.0
        %637 = vmatmul.mubr.f32.gmra.mxu0 %v512
        %v638 = vpop.f32.mrf.mxu0
        %v639 = vadd.f32 %v565, %v638
        %v640 = vpop.f32.mrf.mxu0
        %v641 = vadd.f32 %v569, %v640
        %642 = vmatprep.mubr.f32.mxu0 0.0
        %643 = vmatmul.mubr.f32.gmra.mxu0 %v513
        %v644 = vpop.f32.mrf.mxu0
        %v645 = vadd.f32 %v565, %v644
        %v646 = vpop.f32.mrf.mxu0
        %v647 = vadd.f32 %v569, %v646
        %648 = vmatprep.mubr.f32.mxu0 0.0
        %649 = vmatmul.mubr.f32.gmra.mxu0 %v514
        %v650 = vpop.f32.mrf.mxu0
        %v651 = vadd.f32 %v565, %v650
        %v652 = vpop.f32.mrf.mxu0
        %v653 = vadd.f32 %v569, %v652
        %654 = vmatprep.mubr.f32.mxu0 0.0
        %655 = vmatmul.mubr.f32.gmra.mxu0 %v515
        %v656 = vpop.f32.mrf.mxu0
        %v657 = vadd.f32 %v565, %v656
        %v658 = vpop.f32.mrf.mxu0
        %v659 = vadd.f32 %v569, %v658
        %660 = vmatprep.mubr.f32.mxu0 0.0
        %661 = vmatmul.mubr.f32.gmra.mxu0 %v516
        %v662 = vpop.f32.mrf.mxu0
        %v663 = vadd.f32 %v565, %v662
        %v664 = vpop.f32.mrf.mxu0
        %v665 = vadd.f32 %v569, %v664
        %666 = vmatprep.mubr.f32.mxu0 0.0
        %667 = vmatmul.mubr.f32.gmra.mxu0 %v517
        %v668 = vpop.f32.mrf.mxu0
        %v669 = vadd.f32 %v565, %v668
        %v670 = vpop.f32.mrf.mxu0
        %v671 = vadd.f32 %v569, %v670
        %672 = vmatprep.mubr.f32.mxu0 0.0
        %673 = vmatmul.mubr.f32.gmra.mxu0 %v518
        %v674 = vpop.f32.mrf.mxu0
        %v675 = vadd.f32 %v565, %v674
        %v676 = vpop.f32.mrf.mxu0
        %v677 = vadd.f32 %v569, %v676
        %678 = vmatprep.mubr.f32.mxu0 0.0
        %679 = vmatmul.mubr.f32.gmra.mxu0 %v519
        %v680 = vpop.f32.mrf.mxu0
        %v681 = vadd.f32 %v565, %v680
        %v682 = vpop.f32.mrf.mxu0
        %v683 = vadd.f32 %v569, %v682
        %684 = vmatprep.mubr.f32.mxu0 0.0
        %685 = vmatmul.mubr.f32.gmra.mxu0 %v520
        %v686 = vpop.f32.mrf.mxu0
        %v687 = vadd.f32 %v565, %v686
        %v688 = vpop.f32.mrf.mxu0
        %v689 = vadd.f32 %v569, %v688
        %690 = vmatprep.mubr.f32.mxu0 0.0
        %691 = vmatmul.mubr.f32.gmra.mxu0 %v521
        %v692 = vpop.f32.mrf.mxu0
        %v693 = vadd.f32 %v565, %v692
        %v694 = vpop.f32.mrf.mxu0
        %v695 = vadd.f32 %v569, %v694
        %696 = vmatprep.mubr.f32.mxu0 0.0
        %697 = vmatmul.mubr.f32.gmra.mxu0 %v522
        %v698 = vpop.f32.mrf.mxu0
        %v699 = vadd.f32 %v565, %v698
        %v700 = vpop.f32.mrf.mxu0
        %v701 = vadd.f32 %v569, %v700
        %702 = vmatprep.mubr.f32.mxu0 0.0
        %703 = vmatmul.mubr.f32.gmra.mxu0 %v523
        %v704 = vpop.f32.mrf.mxu0
        %v705 = vadd.f32 %v565, %v704
        %v706 = vpop.f32.mrf.mxu0
        %v707 = vadd.f32 %v569, %v706
        %708 = vmatprep.mubr.f32.mxu0 0.0
        %709 = vmatmul.mubr.f32.gmra.mxu0 %v524
        %v710 = vpop.f32.mrf.mxu0
        %v711 = vadd.f32 %v565, %v710
        %v712 = vpop.f32.mrf.mxu0
        %v713 = vadd.f32 %v569, %v712
        %714 = vmatprep.mubr.f32.mxu0 0.0
        %715 = vmatmul.mubr.f32.gmra.mxu0 %v525
        %v716 = vpop.f32.mrf.mxu0
        %v717 = vadd.f32 %v565, %v716
        %v718 = vpop.f32.mrf.mxu0
        %v719 = vadd.f32 %v569, %v718
        %720 = vmatprep.mubr.f32.mxu0 0.0
        %721 = vmatmul.mubr.f32.gmra.mxu0 %v526
        %v722 = vpop.f32.mrf.mxu0
        %v723 = vadd.f32 %v565, %v722
        %v724 = vpop.f32.mrf.mxu0
        %v725 = vadd.f32 %v569, %v724
        %726 = vmatprep.mubr.f32.mxu0 0.0
        %727 = vmatmul.mubr.f32.gmra.mxu0 %v527
        %v728 = vpop.f32.mrf.mxu0
        %v729 = vadd.f32 %v565, %v728
        %v730 = vpop.f32.mrf.mxu0
        %v731 = vadd.f32 %v569, %v730
        %732 = vdwg.mxu0
        %733 = vst [vmem:[%s303] sm:$0xff] %v312
        %734 = vst [vmem:[%s303 + $0x10] sm:$0xff] %v314
        %735 = vst [vmem:[%s303 + $0x20] sm:$0xff] %v316
        %736 = vst [vmem:[%s303 + $0x30] sm:$0xff] %v318
        %737 = vst [vmem:[%s303 + $0x40] sm:$0xff] %v320
        %738 = vst [vmem:[%s303 + $0x50] sm:$0xff] %v322
        %739 = vst [vmem:[%s303 + $0x60] sm:$0xff] %v324
        %740 = vst [vmem:[%s303 + $0x70] sm:$0xff] %v326
        %741 = vst [vmem:[%s303 + $0x80] sm:$0xff] %v328
        %742 = vst [vmem:[%s303 + $0x90] sm:$0xff] %v330
        %743 = vst [vmem:[%s303 + $0xa0] sm:$0xff] %v332
        %744 = vst [vmem:[%s303 + $0xb0] sm:$0xff] %v334
        %745 = vst [vmem:[%s303 + $0xc0] sm:$0xff] %v336
        %746 = vst [vmem:[%s303 + $0xd0] sm:$0xff] %v338
        %747 = vst [vmem:[%s303 + $0xe0] sm:$0xff] %v340
        %748 = vst [vmem:[%s303 + $0xf0] sm:$0xff] %v342
        %v749 = vmul.f32 %v639, 1.442695
        %v750 = vpow.pop %v749
        %v751 = vmul.f32 %v645, 1.442695
        %v752 = vpow.pop %v751
        %v753 = vmul.f32 %v651, 1.442695
        %v754 = vpow.pop %v753
        %v755 = vmul.f32 %v657, 1.442695
        %v756 = vpow.pop %v755
        %v757 = vmul.f32 %v663, 1.442695
        %v758 = vpow.pop %v757
        %v759 = vmul.f32 %v669, 1.442695
        %v760 = vpow.pop %v759
        %v761 = vmul.f32 %v675, 1.442695
        %v762 = vpow.pop %v761
        %v763 = vmul.f32 %v681, 1.442695
        %v764 = vpow.pop %v763
        %v765 = vmul.f32 %v687, 1.442695
        %v766 = vpow.pop %v765
        %v767 = vmul.f32 %v693, 1.442695
        %v768 = vpow.pop %v767
        %v769 = vmul.f32 %v699, 1.442695
        %v770 = vpow.pop %v769
        %v771 = vmul.f32 %v705, 1.442695
        %v772 = vpow.pop %v771
        %v773 = vmul.f32 %v711, 1.442695
        %v774 = vpow.pop %v773
        %v775 = vmul.f32 %v717, 1.442695
        %v776 = vpow.pop %v775
        %v777 = vmul.f32 %v723, 1.442695
        %v778 = vpow.pop %v777
        %v779 = vmul.f32 %v729, 1.442695
        %v780 = vpow.pop %v779
        %v781 = vmul.f32 %v750, %v313
        %v782 = vmul.f32 %v752, %v315
        %v783 = vmul.f32 %v754, %v317
        %v784 = vmul.f32 %v756, %v319
        %v785 = vmul.f32 %v758, %v321
        %v786 = vmul.f32 %v760, %v323
        %v787 = vmul.f32 %v762, %v325
        %v788 = vmul.f32 %v764, %v327
        %v789 = vmul.f32 %v766, %v329
        %v790 = vmul.f32 %v768, %v331
        %v791 = vmul.f32 %v770, %v333
        %v792 = vmul.f32 %v772, %v335
        %v793 = vmul.f32 %v774, %v337
        %v794 = vmul.f32 %v776, %v339
        %v795 = vmul.f32 %v778, %v341
        %v796 = vmul.f32 %v780, %v343
        %v797 = vadd.f32 %v781, %v641
        %v798 = vadd.f32 %v782, %v647
        %v799 = vadd.f32 %v783, %v653
        %v800 = vadd.f32 %v784, %v659
        %v801 = vadd.f32 %v785, %v665
        %v802 = vadd.f32 %v786, %v671
        %v803 = vadd.f32 %v787, %v677
        %v804 = vadd.f32 %v788, %v683
        %v805 = vadd.f32 %v789, %v689
        %v806 = vadd.f32 %v790, %v695
        %v807 = vadd.f32 %v791, %v701
        %v808 = vadd.f32 %v792, %v707
        %v809 = vadd.f32 %v793, %v713
        %v810 = vadd.f32 %v794, %v719
        %v811 = vadd.f32 %v795, %v725
        %v812 = vadd.f32 %v796, %v731
        %813 = vst [vmem:[%s303 + $0x8] sm:$0xff] %v797
        %814 = vst [vmem:[%s303 + $0x18] sm:$0xff] %v798
        %815 = vst [vmem:[%s303 + $0x28] sm:$0xff] %v799
        %816 = vst [vmem:[%s303 + $0x38] sm:$0xff] %v800
        %817 = vst [vmem:[%s303 + $0x48] sm:$0xff] %v801
        %818 = vst [vmem:[%s303 + $0x58] sm:$0xff] %v802
        %819 = vst [vmem:[%s303 + $0x68] sm:$0xff] %v803
        %820 = vst [vmem:[%s303 + $0x78] sm:$0xff] %v804
        %821 = vst [vmem:[%s303 + $0x88] sm:$0xff] %v805
        %822 = vst [vmem:[%s303 + $0x98] sm:$0xff] %v806
        %823 = vst [vmem:[%s303 + $0xa8] sm:$0xff] %v807
        %824 = vst [vmem:[%s303 + $0xb8] sm:$0xff] %v808
        %825 = vst [vmem:[%s303 + $0xc8] sm:$0xff] %v809
        %826 = vst [vmem:[%s303 + $0xd8] sm:$0xff] %v810
        %827 = vst [vmem:[%s303 + $0xe8] sm:$0xff] %v811
        %828 = vst [vmem:[%s303 + $0xf8] sm:$0xff] %v812
        %829 = vxpose.xlu0.b32.start [1/16] %v639, 128
        %830 = vxpose.xlu0.b32.cont [2/16] %v645, 128
        %831 = vxpose.xlu0.b32.cont [3/16] %v651, 128
        %832 = vxpose.xlu0.b32.cont [4/16] %v657, 128
        %833 = vxpose.xlu0.b32.cont [5/16] %v663, 128
        %834 = vxpose.xlu0.b32.cont [6/16] %v669, 128
        %835 = vxpose.xlu0.b32.cont [7/16] %v675, 128
        %836 = vxpose.xlu0.b32.cont [8/16] %v681, 128
        %837 = vxpose.xlu0.b32.cont [9/16] %v687, 128
        %838 = vxpose.xlu0.b32.cont [10/16] %v693, 128
        %839 = vxpose.xlu0.b32.cont [11/16] %v699, 128
        %840 = vxpose.xlu0.b32.cont [12/16] %v705, 128
        %841 = vxpose.xlu0.b32.cont [13/16] %v711, 128
        %842 = vxpose.xlu0.b32.cont [14/16] %v717, 128
        %843 = vxpose.xlu0.b32.cont [15/16] %v723, 128
        %844 = vxpose.xlu0.b32.end [16/16] %v729, 128
        %v845 = vpop.trf.xlu0
        %v846 = vpop.trf.xlu0
        %v847 = vpop.trf.xlu0
        %v848 = vpop.trf.xlu0
        %v849 = vpop.trf.xlu0
        %v850 = vpop.trf.xlu0
        %v851 = vpop.trf.xlu0
        %v852 = vpop.trf.xlu0
        %v853 = vpop.trf.xlu0
        %v854 = vpop.trf.xlu0
        %v855 = vpop.trf.xlu0
        %v856 = vpop.trf.xlu0
        %v857 = vpop.trf.xlu0
        %v858 = vpop.trf.xlu0
        %v859 = vpop.trf.xlu0
        %v860 = vpop.trf.xlu0
        %v861 = vadd.f32 %v845, %v846
        %v862 = vadd.f32 %v861, %v847
        %v863 = vadd.f32 %v862, %v848
        %v864 = vadd.f32 %v863, %v849
        %v865 = vadd.f32 %v864, %v850
        %v866 = vadd.f32 %v865, %v851
        %v867 = vadd.f32 %v866, %v852
        %v868 = vadd.f32 %v867, %v853
        %v869 = vadd.f32 %v868, %v854
        %v870 = vadd.f32 %v869, %v855
        %v871 = vadd.f32 %v870, %v856
        %v872 = vadd.f32 %v871, %v857
        %v873 = vadd.f32 %v872, %v858
        %v874 = vadd.f32 %v873, %v859
        %v875 = vadd.f32 %v874, %v860
        %v876 = vrot.slane %v875, 4
        %v877 = vadd.f32 %v875, %v876
        %v878 = vrot.slane %v877, 2
        %v879 = vadd.f32 %v877, %v878
        %v880 = vrot.slane %v879, 1
        %v881 = vadd.f32 %v879, %v880
        %882 = vst [vmem:[%s309] sm:$0x1] %v881
        %s883 = sand.u32 %s146, 1
        %s884 = scalar_lea.sflag [#allocation4], %s883
        %s885 = sand.u32 %s146, 1
        %s886 = smul.addr %s885, 256
        %s887 = scalar_lea.vmem [#allocation8], %s886
        %s888 = sand.u32 %s172, 1
        %s889 = scalar_lea.sflag [#allocation10], %s888
        %s890 = sand.u32 %s172, 1
        %s891 = scalar_lea.vmem [#allocation9], %s890
        // Predicated region
        $region53: #{tpu_custom_call.1} parent=39 // pred_check
          %p892 = pneg %p156
        $region54: #{tpu_custom_call.1} parent=39 // pred_check_branch
          %894 = sbr.rel (%p892) target = $region56
        $region55: #{tpu_custom_call.1} parent=39 // pred_region
          %s895 = smul.u32 16, %s28
          %s897 = ssub.s32 4096, 4096
          %898 = vsyncadd %s884, %s897
          %s899 = smul.addr %s895, 2
          %s900 = smul.addr %s899, 128
          %s901 = scalar_lea.hbm %s5, %s900
          %s902 = sshll.u32 %s887, 4
          %s903 = int_to_ptr.vmem [resolvable:$true] %s902
          %908 = dma.vmem_to_hbm [thread:$0]  %s903, 4096, %s901, %s884, 256, 256, 16
        $region56: #{tpu_custom_call.1} parent=39 // pred_fallthru
          _
        // Predicated region
        $region57: #{tpu_custom_call.1} parent=39 // pred_check
          %p909 = pneg %p182
        $region58: #{tpu_custom_call.1} parent=39 // pred_check_branch
          %911 = sbr.rel (%p909) target = $region60
        $region59: #{tpu_custom_call.1} parent=39 // pred_region
          %s913 = ssub.s32 16, 16
          %914 = vsyncadd %s889, %s913
          %s915 = smul.addr %s28, 16
          %s916 = scalar_lea.hbm %s6, %s915
          %s918 = sshll.u32 %s891, 4
          %s919 = int_to_ptr.vmem [resolvable:$true] %s918
          %921 = dma.vmem_to_hbm [thread:$0]  %s919, 16, %s916, %s889
        $region60: #{tpu_custom_call.1} parent=39 // pred_fallthru
          _
      $region40: #{tpu_custom_call.1} parent=5 // pred_fallthru
        _
      %p922 = scmp.le.s32.totalorder 2, %s23
      // Predicated region
      $region61: #{tpu_custom_call.1} parent=5 // pred_check
        %p923 = pneg %p922
      $region62: #{tpu_custom_call.1} parent=5 // pred_check_branch
        %925 = sbr.rel (%p923) target = $region64
      $region63: #{tpu_custom_call.1} parent=5 // pred_region
        %s926 = ssub.s32 %s23, 2
        // Predicated region
        $region65: #{tpu_custom_call.1} parent=63 // pred_check
          %p927 = pneg %p162
        $region66: #{tpu_custom_call.1} parent=63 // pred_check_branch
          %929 = sbr.rel (%p927) target = $region68
        $region67: #{tpu_custom_call.1} parent=63 // pred_region
          %s930 = sand.u32 %s147, 1
          %s931 = scalar_lea.sflag [#allocation4], %s930
          %s932 = sand.u32 %s147, 1
          %s933 = smul.addr %s932, 256
          %s934 = scalar_lea.vmem [#allocation8], %s933
          %935 = dma.done %s931, 4096
        $region68: #{tpu_custom_call.1} parent=63 // pred_fallthru
          _
        // Predicated region
        $region69: #{tpu_custom_call.1} parent=63 // pred_check
          %p936 = pneg %p188
        $region70: #{tpu_custom_call.1} parent=63 // pred_check_branch
          %938 = sbr.rel (%p936) target = $region72
        $region71: #{tpu_custom_call.1} parent=63 // pred_region
          %s939 = sand.u32 %s173, 1
          %s940 = scalar_lea.sflag [#allocation10], %s939
          %s941 = sand.u32 %s173, 1
          %s942 = scalar_lea.vmem [#allocation9], %s941
          %943 = dma.done %s940, 16
        $region72: #{tpu_custom_call.1} parent=63 // pred_fallthru
          _
      $region64: #{tpu_custom_call.1} parent=5 // pred_fallthru
        _
    $region6: #{tpu_custom_call.1} parent=1 // loop_footer
      %s27 = sadd.s32 1, %s23
    $region7: #{tpu_custom_call.1} parent=1 // loop_footer_branch
      %22 = sbr.rel target = $region3
    $region8: #{tpu_custom_call.1} parent=1 // loop_exit
      _
    %944 = vsyncpa [#allocation3], 1
    %s945 = scalar_lea.sflag [#allocation3], 1
    %946 = vsyncpa %s945, 1
    %947 = vsyncpa [#allocation6], 1
    %948 = vsyncpa [#allocation4], 1
    %s949 = scalar_lea.sflag [#allocation4], 1
    %950 = vsyncpa %s949, 1
    %951 = vsyncpa [#allocation10], 1
    %s952 = scalar_lea.sflag [#allocation10], 1
    %953 = vsyncpa %s952, 1

</llo_original>
